<compile_context>
chip_gen: v5e
topology: v5e:2x2
jax: 0.10.0
libtpu: 0.0.40
codegen_flags: <defaults>
</compile_context>

<pallas_src>
import math
from functools import partial

import jax
import jax.numpy as jnp
from jax import lax
from jax.experimental import pallas as pl
from jax.experimental.pallas import tpu as pltpu


_MASK_VALUE = -0.7 * float(jnp.finfo(jnp.float32).max)


def _nma_kernel(q_ref, k_ref, v_ref, o_ref, qh_ref, m_ref, l_ref, acc_ref, *,
                scale, mask_scale, mask_flag, n_heads, e_dim, d_dim, pv_dtype):
    lt = pl.program_id(1)            # query-tile index
    st = pl.program_id(2)            # key/value-tile index (innermost, arbitrary)
    n_st = pl.num_programs(2)

    H, E, D = n_heads, e_dim, d_dim
    tl = qh_ref.shape[1]
    ts = k_ref.shape[1]
    row0 = lt * tl                   # first global query row of this tile
    col0 = st * ts                   # first global key column of this tile

    @pl.when(st == 0)
    def _init():
        m_ref[...] = jnp.full(m_ref.shape, -jnp.inf, dtype=jnp.float32)
        l_ref[...] = jnp.zeros(l_ref.shape, dtype=jnp.float32)
        acc_ref[...] = jnp.zeros(acc_ref.shape, dtype=jnp.float32)
        # Cache scaled per-head q slices once per q-tile (re-used every S step).
        for h in range(H):
            qh_ref[h] = (q_ref[0, :, h * E:(h + 1) * E] * scale).astype(qh_ref.dtype)

    def _step(apply_mask):
        if apply_mask:
            # Single iota difference d = col - row; mask is one/two compares.
            d = ((col0 - row0)
                 + lax.broadcasted_iota(jnp.int32, (tl, ts), 1)
                 - lax.broadcasted_iota(jnp.int32, (tl, ts), 0))
            if mask_flag:
                # causal (d > 0) union band (|d| < ms)  ==  d > -ms
                masked = d > -mask_scale
            else:
                masked = (d > -mask_scale) & (d < mask_scale)
        for h in range(H):
            q_h = qh_ref[h]                                       # (TL, E)
            k_h = k_ref[0, :, h * E:(h + 1) * E].astype(qh_ref.dtype)   # (TS, E)
            v_h = v_ref[0, :, h * D:(h + 1) * D]                  # (TS, D)
            # scores = q @ k^T (contract over E on both sides, no k.T copy)
            s = lax.dot_general(q_h, k_h,
                                dimension_numbers=(((1,), (1,)), ((), ())),
                                preferred_element_type=jnp.float32)   # (TL, TS)
            if apply_mask:
                s = jnp.where(masked, _MASK_VALUE, s)
            # online softmax with deferred (unnormalized) accumulation
            m_prev = m_ref[h]                                     # (TL, 1)
            m_next = jnp.maximum(m_prev, jnp.max(s, axis=-1, keepdims=True))
            alpha = jnp.exp(m_prev - m_next)
            p = jnp.exp(s - m_next)                               # (TL, TS)
            l_ref[h] = alpha * l_ref[h] + jnp.sum(p, axis=-1, keepdims=True)
            acc_ref[h] = alpha * acc_ref[h] + lax.dot_general(
                p.astype(pv_dtype), v_h.astype(pv_dtype),
                dimension_numbers=(((1,), (0,)), ((), ())),
                preferred_element_type=jnp.float32)
            m_ref[h] = m_next

    def _dispatch():
        if mask_flag or mask_scale > 0:
            # Skip all mask construction for tiles the mask cannot touch.
            if mask_flag:
                needs = (col0 + (ts - 1) - row0) > -mask_scale
            else:
                needs = (((col0 + (ts - 1) - row0) > -mask_scale)
                         & ((col0 - (row0 + tl - 1)) < mask_scale))

            @pl.when(needs)
            def _masked():
                _step(True)

            @pl.when(jnp.logical_not(needs))
            def _unmasked():
                _step(False)
        else:
            _step(False)

    if mask_flag:
        # Causal: key tiles entirely above the diagonal of this q-tile are
        # fully masked -> skip all MXU/softmax work (their DMA is also skipped
        # via the clamped index_map in the wrapper).
        @pl.when(col0 <= row0 + tl - 1)
        def _():
            _dispatch()
    else:
        _dispatch()

    @pl.when(st == n_st - 1)
    def _finalize():
        for h in range(H):
            l = l_ref[h]
            inv = pl.reciprocal(l, approx=True)       # EUP slot
            inv = inv * (2.0 - l * inv)               # one Newton step -> ~f32
            o_ref[0, :, h * D:(h + 1) * D] = (acc_ref[h] * inv).astype(o_ref.dtype)


def _pick_tile(dim, candidates):
    for c in candidates:
        if dim >= c and dim % c == 0:
            return c
    return dim   # fall back to the full (untiled) dimension


def nma_forward(queries, keys, values, attn_mask=None, *, scale=None,
                mask_scale=0, mask_flag=False, block_l=None, block_s=None,
                matmul_dtype=None, vmem_limit_bytes=48 * 1024 * 1024):
    """queries (B,L,H,E), keys (B,S,H,E), values (B,S,H,D) -> (V (B,L,H,D), None)."""
    if attn_mask is not None:
        # TODO(synk): externally supplied attn_mask is not wired in; mask_flag
        # uses the default TriangularCausalMask only.
        raise NotImplementedError("custom attn_mask is not supported")

    B, L, H, E = queries.shape
    _, S, _, D = values.shape
    scale = float(scale) if scale is not None else 1.0 / math.sqrt(E)

    # Large query tiles (K/V HBM re-reads scale as L/tl); K/V tiles stream
    # along the innermost grid axis.  All candidates are multiples of 8.
    tl = block_l or _pick_tile(L, (512, 256, 128, 64, 32, 16, 8))
    ts = block_s or _pick_tile(S, (512, 256, 128, 64, 32, 16, 8))
    assert L % tl == 0 and S % ts == 0, "sequence lengths must tile evenly"

    # Native-layout kernel: fold (H, E)/(H, D) into one contiguous feature axis
    # (a free reshape, NOT a transpose) -> no extra HBM round-trips and fully
    # contiguous block DMAs.
    q2 = queries.reshape(B, L, H * E)
    k2 = keys.reshape(B, S, H * E)
    v2 = values.reshape(B, S, H * D)

    if mask_flag:
        # Clamp the K/V block index so fully-masked (above-diagonal) key tiles
        # never trigger a new DMA; the kernel also skips their compute.
        def kv_index(b, lt, st):
            return (b, jnp.minimum(st, (lt * tl + tl - 1) // ts), 0)
    else:
        def kv_index(b, lt, st):
            return (b, st, 0)

    qh_dtype = matmul_dtype or queries.dtype
    pv_dtype = matmul_dtype or values.dtype

    isz = jnp.dtype(queries.dtype).itemsize
    cost = pl.CostEstimate(
        flops=2 * B * H * L * S * (E + D),
        transcendentals=B * H * L * S,
        bytes_accessed=(B * L * H * E + B * S * H * E + B * S * H * D
                        + B * L * H * D) * isz)

    out = pl.pallas_call(
        partial(_nma_kernel, scale=scale, mask_scale=mask_scale,
                mask_flag=mask_flag, n_heads=H, e_dim=E, d_dim=D,
                pv_dtype=pv_dtype),
        out_shape=jax.ShapeDtypeStruct((B, L, H * D), queries.dtype),
        grid_spec=pltpu.PrefetchScalarGridSpec(
            num_scalar_prefetch=0,
            grid=(B, L // tl, S // ts),
            in_specs=[
                pl.BlockSpec((1, tl, H * E), lambda b, lt, st: (b, lt, 0)),
                pl.BlockSpec((1, ts, H * E), kv_index),
                pl.BlockSpec((1, ts, H * D), kv_index),
            ],
            out_specs=pl.BlockSpec((1, tl, H * D), lambda b, lt, st: (b, lt, 0)),
            scratch_shapes=[
                pltpu.VMEM((H, tl, E), qh_dtype),     # scaled per-head q
                pltpu.VMEM((H, tl, 1), jnp.float32),  # running max  m
                pltpu.VMEM((H, tl, 1), jnp.float32),  # running sum  l
                pltpu.VMEM((H, tl, D), jnp.float32),  # unnormalized output acc
            ],
        ),
        compiler_params=pltpu.CompilerParams(
            dimension_semantics=("parallel", "parallel", "arbitrary"),
            vmem_limit_bytes=vmem_limit_bytes),
        cost_estimate=cost,
    )(q2, k2, v2)

    return out.reshape(B, L, H, D), None


def nma_reference(queries, keys, values, *, scale=None, mask_scale=0,
                  mask_flag=False):
    """Pure-JAX reference mirroring the PyTorch forward."""
    B, L, H, E = queries.shape
    _, S, _, D = values.shape
    scale = float(scale) if scale is not None else 1.0 / math.sqrt(E)
    scores = jnp.einsum('blhe,bshe->bhls', queries, keys)
    i = jnp.arange(L)[:, None]
    j = jnp.arange(S)[None, :]
    if mask_flag:
        scores = jnp.where(j > i, -jnp.inf, scores)
    if mask_scale > 0:
        scores = jnp.where(jnp.abs(i - j) < mask_scale, -jnp.inf, scores)
    attn = scale * scores
    A = jax.nn.softmax(attn, axis=-1)
    return jnp.einsum('bhls,bshd->blhd', A, values)


if __name__ == "__main__":
    base_key = jax.random.PRNGKey(0)
    ok = True

    def run_case(B, L, S, H, E, D, mask_scale, mask_flag,
                 block_l=None, block_s=None):
        seed = L * 131 + S + 7 * mask_scale + (1 if mask_flag else 0)
        kq, kk, kv = jax.random.split(jax.random.fold_in(base_key, seed), 3)
        q = jax.random.normal(kq, (B, L, H, E), dtype=jnp.float32)
        k = jax.random.normal(kk, (B, S, H, E), dtype=jnp.float32)
        v = jax.random.normal(kv, (B, S, H, D), dtype=jnp.float32)
        V, _ = nma_forward(q, k, v, mask_scale=mask_scale, mask_flag=mask_flag,
                           block_l=block_l, block_s=block_s)
        V = jax.block_until_ready(V)
        V_ref = nma_reference(q, k, v, mask_scale=mask_scale, mask_flag=mask_flag)
        return bool(jnp.allclose(V, V_ref, atol=1e-4, rtol=1e-4))

    # small single-tile shapes: module default, band mask, causal mask
    for ms, mf in [(0, False), (3, False), (0, True)]:
        ok &= run_case(2, 16, 16, 2, 32, 32, ms, mf)

    # multi-tile path: online softmax across a 4x4 (L, S) tile grid, causal
    # tile skipping + clamped K/V DMA, and a band mask crossing tile boundaries
    for ms, mf in [(0, False), (5, False), (0, True)]:
        ok &= run_case(1, 128, 128, 2, 32, 32, ms, mf, block_l=32, block_s=32)

    print("KERNEL_OK" if ok else "KERNEL_MISMATCH")
</pallas_src>

<mosaic_0001>
module attributes {stable_mosaic.version = 11 : i64} {
  func.func @_nma_kernel(%arg0: i32, %arg1: i32, %arg2: i32, %arg3: memref<1x16x64xf32, #tpu.memory_space<vmem>>, %arg4: memref<1x16x64xf32, #tpu.memory_space<vmem>>, %arg5: memref<1x16x64xf32, #tpu.memory_space<vmem>>, %arg6: memref<1x16x64xf32, #tpu.memory_space<vmem>>, %arg7: memref<2x16x32xf32, #tpu.memory_space<vmem>>, %arg8: memref<2x16x1xf32, #tpu.memory_space<vmem>>, %arg9: memref<2x16x1xf32, #tpu.memory_space<vmem>>, %arg10: memref<2x16x32xf32, #tpu.memory_space<vmem>>) attributes {dimension_semantics = [#tpu.dimension_semantics<parallel>, #tpu.dimension_semantics<parallel>, #tpu.dimension_semantics<arbitrary>], iteration_bounds = array<i64: 2, 1, 1>, scalar_prefetch = 0 : i64, scratch_operands = 4 : i64, tpu.core_type = #tpu.core_type<tc>, window_params = [{transform_indices = @transform_0, window_bounds = array<i64: 1, 16, 64>}, {transform_indices = @transform_1, window_bounds = array<i64: 1, 16, 64>}, {transform_indices = @transform_2, window_bounds = array<i64: 1, 16, 64>}, {transform_indices = @transform_3, window_bounds = array<i64: 1, 16, 64>}]} {
    %c0_i32 = arith.constant 0 : i32
    %0 = arith.cmpi eq, %arg2, %c0_i32 : i32
    %1 = arith.extui %0 : i1 to i32
    %c0_i32_0 = arith.constant 0 : i32
    %2 = arith.cmpi ne, %1, %c0_i32_0 : i32
    scf.if %2 {
      %cst_61 = arith.constant 0xFF800000 : f32
      %82 = vector.broadcast %cst_61 : f32 to vector<2x16x1xf32>
      %c0_62 = arith.constant 0 : index
      %c0_63 = arith.constant 0 : index
      %c0_64 = arith.constant 0 : index
      %83 = vector.load %arg8[%c0_62, %c0_63, %c0_64] : memref<2x16x1xf32, #tpu.memory_space<vmem>>, vector<2x16x1xf32>
      tpu.vector_store %arg8[%c0_62, %c0_63, %c0_64], %82 {strides = array<i32>} : memref<2x16x1xf32, #tpu.memory_space<vmem>>, vector<2x16x1xf32>,
      %cst_65 = arith.constant 0.000000e+00 : f32
      %84 = vector.broadcast %cst_65 : f32 to vector<2x16x1xf32>
      %c0_66 = arith.constant 0 : index
      %c0_67 = arith.constant 0 : index
      %c0_68 = arith.constant 0 : index
      %85 = vector.load %arg9[%c0_66, %c0_67, %c0_68] : memref<2x16x1xf32, #tpu.memory_space<vmem>>, vector<2x16x1xf32>
      tpu.vector_store %arg9[%c0_66, %c0_67, %c0_68], %84 {strides = array<i32>} : memref<2x16x1xf32, #tpu.memory_space<vmem>>, vector<2x16x1xf32>,
      %cst_69 = arith.constant 0.000000e+00 : f32
      %86 = vector.broadcast %cst_69 : f32 to vector<2x16x32xf32>
      %c0_70 = arith.constant 0 : index
      %c0_71 = arith.constant 0 : index
      %c0_72 = arith.constant 0 : index
      %87 = vector.load %arg10[%c0_70, %c0_71, %c0_72] : memref<2x16x32xf32, #tpu.memory_space<vmem>>, vector<2x16x32xf32>
      tpu.vector_store %arg10[%c0_70, %c0_71, %c0_72], %86 {strides = array<i32>} : memref<2x16x32xf32, #tpu.memory_space<vmem>>, vector<2x16x32xf32>,
      %c0_73 = arith.constant 0 : index
      %c0_74 = arith.constant 0 : index
      %c0_75 = arith.constant 0 : index
      %88 = vector.load %arg3[%c0_73, %c0_74, %c0_75] : memref<1x16x64xf32, #tpu.memory_space<vmem>>, vector<1x16x32xf32>
      %89 = vector.shape_cast %88 : vector<1x16x32xf32> to vector<16x32xf32>
      %cst_76 = arith.constant 0.176776692 : f32
      %90 = vector.broadcast %cst_76 : f32 to vector<16x32xf32>
      %91 = arith.mulf %89, %90 : vector<16x32xf32>
      %c0_77 = arith.constant 0 : index
      %c0_78 = arith.constant 0 : index
      %c0_79 = arith.constant 0 : index
      %92 = vector.load %arg7[%c0_77, %c0_78, %c0_79] : memref<2x16x32xf32, #tpu.memory_space<vmem>>, vector<1x16x32xf32>
      %93 = vector.shape_cast %92 : vector<1x16x32xf32> to vector<16x32xf32>
      %94 = vector.shape_cast %91 : vector<16x32xf32> to vector<1x16x32xf32>
      tpu.vector_store %arg7[%c0_77, %c0_78, %c0_79], %94 {strides = array<i32>} : memref<2x16x32xf32, #tpu.memory_space<vmem>>, vector<1x16x32xf32>,
      %c0_80 = arith.constant 0 : index
      %c0_81 = arith.constant 0 : index
      %c32_82 = arith.constant 32 : index
      %95 = vector.load %arg3[%c0_80, %c0_81, %c32_82] : memref<1x16x64xf32, #tpu.memory_space<vmem>>, vector<1x16x32xf32>
      %96 = vector.shape_cast %95 : vector<1x16x32xf32> to vector<16x32xf32>
      %cst_83 = arith.constant 0.176776692 : f32
      %97 = vector.broadcast %cst_83 : f32 to vector<16x32xf32>
      %98 = arith.mulf %96, %97 : vector<16x32xf32>
      %c1_84 = arith.constant 1 : index
      %c0_85 = arith.constant 0 : index
      %c0_86 = arith.constant 0 : index
      %99 = vector.load %arg7[%c1_84, %c0_85, %c0_86] : memref<2x16x32xf32, #tpu.memory_space<vmem>>, vector<1x16x32xf32>
      %100 = vector.shape_cast %99 : vector<1x16x32xf32> to vector<16x32xf32>
      %101 = vector.shape_cast %98 : vector<16x32xf32> to vector<1x16x32xf32>
      tpu.vector_store %arg7[%c1_84, %c0_85, %c0_86], %101 {strides = array<i32>} : memref<2x16x32xf32, #tpu.memory_space<vmem>>, vector<1x16x32xf32>,
    } else {
    }
    %c0 = arith.constant 0 : index
    %c0_1 = arith.constant 0 : index
    %c0_2 = arith.constant 0 : index
    %3 = vector.load %arg7[%c0, %c0_1, %c0_2] : memref<2x16x32xf32, #tpu.memory_space<vmem>>, vector<1x16x32xf32>
    %4 = vector.shape_cast %3 : vector<1x16x32xf32> to vector<16x32xf32>
    %c0_3 = arith.constant 0 : index
    %c0_4 = arith.constant 0 : index
    %c0_5 = arith.constant 0 : index
    %5 = vector.load %arg4[%c0_3, %c0_4, %c0_5] : memref<1x16x64xf32, #tpu.memory_space<vmem>>, vector<1x16x32xf32>
    %6 = vector.shape_cast %5 : vector<1x16x32xf32> to vector<16x32xf32>
    %c0_6 = arith.constant 0 : index
    %c0_7 = arith.constant 0 : index
    %c0_8 = arith.constant 0 : index
    %7 = vector.load %arg5[%c0_6, %c0_7, %c0_8] : memref<1x16x64xf32, #tpu.memory_space<vmem>>, vector<1x16x32xf32>
    %8 = vector.shape_cast %7 : vector<1x16x32xf32> to vector<16x32xf32>
    %cst = arith.constant dense<0.000000e+00> : vector<16x16xf32>
    %9 = tpu.matmul %4, %6, %cst {dimension_numbers = #tpu.dot_dimension_numbers<[1], [1], [0], [0], [0, 0, 1, 0], [], []>} : vector<16x32xf32>, vector<16x32xf32>, vector<16x16xf32> -> vector<16x16xf32>
    %c0_9 = arith.constant 0 : index
    %c0_10 = arith.constant 0 : index
    %c0_11 = arith.constant 0 : index
    %10 = vector.load %arg8[%c0_9, %c0_10, %c0_11] : memref<2x16x1xf32, #tpu.memory_space<vmem>>, vector<1x16x1xf32>
    %11 = vector.shape_cast %10 : vector<1x16x1xf32> to vector<16x1xf32>
    %cst_12 = arith.constant dense<0xFF800000> : vector<16xf32>
    %12 = vector.multi_reduction <maximumf>, %9, %cst_12 [1] : vector<16x16xf32> to vector<16xf32>
    %13 = vector.shape_cast %12 : vector<16xf32> to vector<16x1xf32>
    %14 = arith.maximumf %11, %13 : vector<16x1xf32>
    %15 = arith.subf %11, %14 : vector<16x1xf32>
    %16 = math.exp %15 : vector<16x1xf32>
    %17 = vector.broadcast %14 : vector<16x1xf32> to vector<16x16xf32>
    %18 = arith.subf %9, %17 : vector<16x16xf32>
    %19 = math.exp %18 : vector<16x16xf32>
    %c0_13 = arith.constant 0 : index
    %c0_14 = arith.constant 0 : index
    %c0_15 = arith.constant 0 : index
    %20 = vector.load %arg9[%c0_13, %c0_14, %c0_15] : memref<2x16x1xf32, #tpu.memory_space<vmem>>, vector<1x16x1xf32>
    %21 = vector.shape_cast %20 : vector<1x16x1xf32> to vector<16x1xf32>
    %22 = arith.mulf %16, %21 : vector<16x1xf32>
    %cst_16 = arith.constant dense<0.000000e+00> : vector<16xf32>
    %23 = vector.multi_reduction <add>, %19, %cst_16 [1] : vector<16x16xf32> to vector<16xf32>
    %24 = vector.shape_cast %23 : vector<16xf32> to vector<16x1xf32>
    %25 = arith.addf %22, %24 : vector<16x1xf32>
    %c0_17 = arith.constant 0 : index
    %c0_18 = arith.constant 0 : index
    %c0_19 = arith.constant 0 : index
    %26 = vector.load %arg9[%c0_17, %c0_18, %c0_19] : memref<2x16x1xf32, #tpu.memory_space<vmem>>, vector<1x16x1xf32>
    %27 = vector.shape_cast %26 : vector<1x16x1xf32> to vector<16x1xf32>
    %28 = vector.shape_cast %25 : vector<16x1xf32> to vector<1x16x1xf32>
    tpu.vector_store %arg9[%c0_17, %c0_18, %c0_19], %28 {strides = array<i32>} : memref<2x16x1xf32, #tpu.memory_space<vmem>>, vector<1x16x1xf32>,
    %c0_20 = arith.constant 0 : index
    %c0_21 = arith.constant 0 : index
    %c0_22 = arith.constant 0 : index
    %29 = vector.load %arg10[%c0_20, %c0_21, %c0_22] : memref<2x16x32xf32, #tpu.memory_space<vmem>>, vector<1x16x32xf32>
    %30 = vector.shape_cast %29 : vector<1x16x32xf32> to vector<16x32xf32>
    %31 = vector.broadcast %16 : vector<16x1xf32> to vector<16x32xf32>
    %32 = arith.mulf %31, %30 : vector<16x32xf32>
    %cst_23 = arith.constant dense<0.000000e+00> : vector<16x32xf32>
    %33 = tpu.matmul %19, %8, %cst_23 {dimension_numbers = #tpu.dot_dimension_numbers<[1], [0], [0], [1], [0, 0, 1, 1], [], []>} : vector<16x16xf32>, vector<16x32xf32>, vector<16x32xf32> -> vector<16x32xf32>
    %34 = arith.addf %32, %33 : vector<16x32xf32>
    %c0_24 = arith.constant 0 : index
    %c0_25 = arith.constant 0 : index
    %c0_26 = arith.constant 0 : index
    %35 = vector.load %arg10[%c0_24, %c0_25, %c0_26] : memref<2x16x32xf32, #tpu.memory_space<vmem>>, vector<1x16x32xf32>
    %36 = vector.shape_cast %35 : vector<1x16x32xf32> to vector<16x32xf32>
    %37 = vector.shape_cast %34 : vector<16x32xf32> to vector<1x16x32xf32>
    tpu.vector_store %arg10[%c0_24, %c0_25, %c0_26], %37 {strides = array<i32>} : memref<2x16x32xf32, #tpu.memory_space<vmem>>, vector<1x16x32xf32>,
    %c0_27 = arith.constant 0 : index
    %c0_28 = arith.constant 0 : index
    %c0_29 = arith.constant 0 : index
    %38 = vector.load %arg8[%c0_27, %c0_28, %c0_29] : memref<2x16x1xf32, #tpu.memory_space<vmem>>, vector<1x16x1xf32>
    %39 = vector.shape_cast %38 : vector<1x16x1xf32> to vector<16x1xf32>
    %40 = vector.shape_cast %14 : vector<16x1xf32> to vector<1x16x1xf32>
    tpu.vector_store %arg8[%c0_27, %c0_28, %c0_29], %40 {strides = array<i32>} : memref<2x16x1xf32, #tpu.memory_space<vmem>>, vector<1x16x1xf32>,
    %c1 = arith.constant 1 : index
    %c0_30 = arith.constant 0 : index
    %c0_31 = arith.constant 0 : index
    %41 = vector.load %arg7[%c1, %c0_30, %c0_31] : memref<2x16x32xf32, #tpu.memory_space<vmem>>, vector<1x16x32xf32>
    %42 = vector.shape_cast %41 : vector<1x16x32xf32> to vector<16x32xf32>
    %c0_32 = arith.constant 0 : index
    %c0_33 = arith.constant 0 : index
    %c32 = arith.constant 32 : index
    %43 = vector.load %arg4[%c0_32, %c0_33, %c32] : memref<1x16x64xf32, #tpu.memory_space<vmem>>, vector<1x16x32xf32>
    %44 = vector.shape_cast %43 : vector<1x16x32xf32> to vector<16x32xf32>
    %c0_34 = arith.constant 0 : index
    %c0_35 = arith.constant 0 : index
    %c32_36 = arith.constant 32 : index
    %45 = vector.load %arg5[%c0_34, %c0_35, %c32_36] : memref<1x16x64xf32, #tpu.memory_space<vmem>>, vector<1x16x32xf32>
    %46 = vector.shape_cast %45 : vector<1x16x32xf32> to vector<16x32xf32>
    %cst_37 = arith.constant dense<0.000000e+00> : vector<16x16xf32>
    %47 = tpu.matmul %42, %44, %cst_37 {dimension_numbers = #tpu.dot_dimension_numbers<[1], [1], [0], [0], [0, 0, 1, 0], [], []>} : vector<16x32xf32>, vector<16x32xf32>, vector<16x16xf32> -> vector<16x16xf32>
    %c1_38 = arith.constant 1 : index
    %c0_39 = arith.constant 0 : index
    %c0_40 = arith.constant 0 : index
    %48 = vector.load %arg8[%c1_38, %c0_39, %c0_40] : memref<2x16x1xf32, #tpu.memory_space<vmem>>, vector<1x16x1xf32>
    %49 = vector.shape_cast %48 : vector<1x16x1xf32> to vector<16x1xf32>
    %cst_41 = arith.constant dense<0xFF800000> : vector<16xf32>
    %50 = vector.multi_reduction <maximumf>, %47, %cst_41 [1] : vector<16x16xf32> to vector<16xf32>
    %51 = vector.shape_cast %50 : vector<16xf32> to vector<16x1xf32>
    %52 = arith.maximumf %49, %51 : vector<16x1xf32>
    %53 = arith.subf %49, %52 : vector<16x1xf32>
    %54 = math.exp %53 : vector<16x1xf32>
    %55 = vector.broadcast %52 : vector<16x1xf32> to vector<16x16xf32>
    %56 = arith.subf %47, %55 : vector<16x16xf32>
    %57 = math.exp %56 : vector<16x16xf32>
    %c1_42 = arith.constant 1 : index
    %c0_43 = arith.constant 0 : index
    %c0_44 = arith.constant 0 : index
    %58 = vector.load %arg9[%c1_42, %c0_43, %c0_44] : memref<2x16x1xf32, #tpu.memory_space<vmem>>, vector<1x16x1xf32>
    %59 = vector.shape_cast %58 : vector<1x16x1xf32> to vector<16x1xf32>
    %60 = arith.mulf %54, %59 : vector<16x1xf32>
    %cst_45 = arith.constant dense<0.000000e+00> : vector<16xf32>
    %61 = vector.multi_reduction <add>, %57, %cst_45 [1] : vector<16x16xf32> to vector<16xf32>
    %62 = vector.shape_cast %61 : vector<16xf32> to vector<16x1xf32>
    %63 = arith.addf %60, %62 : vector<16x1xf32>
    %c1_46 = arith.constant 1 : index
    %c0_47 = arith.constant 0 : index
    %c0_48 = arith.constant 0 : index
    %64 = vector.load %arg9[%c1_46, %c0_47, %c0_48] : memref<2x16x1xf32, #tpu.memory_space<vmem>>, vector<1x16x1xf32>
    %65 = vector.shape_cast %64 : vector<1x16x1xf32> to vector<16x1xf32>
    %66 = vector.shape_cast %63 : vector<16x1xf32> to vector<1x16x1xf32>
    tpu.vector_store %arg9[%c1_46, %c0_47, %c0_48], %66 {strides = array<i32>} : memref<2x16x1xf32, #tpu.memory_space<vmem>>, vector<1x16x1xf32>,
    %c1_49 = arith.constant 1 : index
    %c0_50 = arith.constant 0 : index
    %c0_51 = arith.constant 0 : index
    %67 = vector.load %arg10[%c1_49, %c0_50, %c0_51] : memref<2x16x32xf32, #tpu.memory_space<vmem>>, vector<1x16x32xf32>
    %68 = vector.shape_cast %67 : vector<1x16x32xf32> to vector<16x32xf32>
    %69 = vector.broadcast %54 : vector<16x1xf32> to vector<16x32xf32>
    %70 = arith.mulf %69, %68 : vector<16x32xf32>
    %cst_52 = arith.constant dense<0.000000e+00> : vector<16x32xf32>
    %71 = tpu.matmul %57, %46, %cst_52 {dimension_numbers = #tpu.dot_dimension_numbers<[1], [0], [0], [1], [0, 0, 1, 1], [], []>} : vector<16x16xf32>, vector<16x32xf32>, vector<16x32xf32> -> vector<16x32xf32>
    %72 = arith.addf %70, %71 : vector<16x32xf32>
    %c1_53 = arith.constant 1 : index
    %c0_54 = arith.constant 0 : index
    %c0_55 = arith.constant 0 : index
    %73 = vector.load %arg10[%c1_53, %c0_54, %c0_55] : memref<2x16x32xf32, #tpu.memory_space<vmem>>, vector<1x16x32xf32>
    %74 = vector.shape_cast %73 : vector<1x16x32xf32> to vector<16x32xf32>
    %75 = vector.shape_cast %72 : vector<16x32xf32> to vector<1x16x32xf32>
    tpu.vector_store %arg10[%c1_53, %c0_54, %c0_55], %75 {strides = array<i32>} : memref<2x16x32xf32, #tpu.memory_space<vmem>>, vector<1x16x32xf32>,
    %c1_56 = arith.constant 1 : index
    %c0_57 = arith.constant 0 : index
    %c0_58 = arith.constant 0 : index
    %76 = vector.load %arg8[%c1_56, %c0_57, %c0_58] : memref<2x16x1xf32, #tpu.memory_space<vmem>>, vector<1x16x1xf32>
    %77 = vector.shape_cast %76 : vector<1x16x1xf32> to vector<16x1xf32>
    %78 = vector.shape_cast %52 : vector<16x1xf32> to vector<1x16x1xf32>
    tpu.vector_store %arg8[%c1_56, %c0_57, %c0_58], %78 {strides = array<i32>} : memref<2x16x1xf32, #tpu.memory_space<vmem>>, vector<1x16x1xf32>,
    %c0_i32_59 = arith.constant 0 : i32
    %79 = arith.cmpi eq, %arg2, %c0_i32_59 : i32
    %80 = arith.extui %79 : i1 to i32
    %c0_i32_60 = arith.constant 0 : i32
    %81 = arith.cmpi ne, %80, %c0_i32_60 : i32
    scf.if %81 {
      %c0_61 = arith.constant 0 : index
      %c0_62 = arith.constant 0 : index
      %c0_63 = arith.constant 0 : index
      %82 = vector.load %arg9[%c0_61, %c0_62, %c0_63] : memref<2x16x1xf32, #tpu.memory_space<vmem>>, vector<1x16x1xf32>
      %83 = vector.shape_cast %82 : vector<1x16x1xf32> to vector<16x1xf32>
      %84 = tpu.reciprocal %83 {approx = true} : vector<16x1xf32> -> vector<16x1xf32>
      %85 = arith.mulf %83, %84 : vector<16x1xf32>
      %cst_64 = arith.constant 2.000000e+00 : f32
      %86 = vector.broadcast %cst_64 : f32 to vector<16x1xf32>
      %87 = arith.subf %86, %85 : vector<16x1xf32>
      %88 = arith.mulf %84, %87 : vector<16x1xf32>
      %c0_65 = arith.constant 0 : index
      %c0_66 = arith.constant 0 : index
      %c0_67 = arith.constant 0 : index
      %89 = vector.load %arg10[%c0_65, %c0_66, %c0_67] : memref<2x16x32xf32, #tpu.memory_space<vmem>>, vector<1x16x32xf32>
      %90 = vector.shape_cast %89 : vector<1x16x32xf32> to vector<16x32xf32>
      %91 = vector.broadcast %88 : vector<16x1xf32> to vector<16x32xf32>
      %92 = arith.mulf %90, %91 : vector<16x32xf32>
      %c0_68 = arith.constant 0 : index
      %c0_69 = arith.constant 0 : index
      %c0_70 = arith.constant 0 : index
      %93 = vector.load %arg6[%c0_68, %c0_69, %c0_70] : memref<1x16x64xf32, #tpu.memory_space<vmem>>, vector<1x16x32xf32>
      %94 = vector.shape_cast %93 : vector<1x16x32xf32> to vector<16x32xf32>
      %95 = vector.shape_cast %92 : vector<16x32xf32> to vector<1x16x32xf32>
      tpu.vector_store %arg6[%c0_68, %c0_69, %c0_70], %95 {strides = array<i32>} : memref<1x16x64xf32, #tpu.memory_space<vmem>>, vector<1x16x32xf32>,
      %c1_71 = arith.constant 1 : index
      %c0_72 = arith.constant 0 : index
      %c0_73 = arith.constant 0 : index
      %96 = vector.load %arg9[%c1_71, %c0_72, %c0_73] : memref<2x16x1xf32, #tpu.memory_space<vmem>>, vector<1x16x1xf32>
      %97 = vector.shape_cast %96 : vector<1x16x1xf32> to vector<16x1xf32>
      %98 = tpu.reciprocal %97 {approx = true} : vector<16x1xf32> -> vector<16x1xf32>
      %99 = arith.mulf %97, %98 : vector<16x1xf32>
      %cst_74 = arith.constant 2.000000e+00 : f32
      %100 = vector.broadcast %cst_74 : f32 to vector<16x1xf32>
      %101 = arith.subf %100, %99 : vector<16x1xf32>
      %102 = arith.mulf %98, %101 : vector<16x1xf32>
      %c1_75 = arith.constant 1 : index
      %c0_76 = arith.constant 0 : index
      %c0_77 = arith.constant 0 : index
      %103 = vector.load %arg10[%c1_75, %c0_76, %c0_77] : memref<2x16x32xf32, #tpu.memory_space<vmem>>, vector<1x16x32xf32>
      %104 = vector.shape_cast %103 : vector<1x16x32xf32> to vector<16x32xf32>
      %105 = vector.broadcast %102 : vector<16x1xf32> to vector<16x32xf32>
      %106 = arith.mulf %104, %105 : vector<16x32xf32>
      %c0_78 = arith.constant 0 : index
      %c0_79 = arith.constant 0 : index
      %c32_80 = arith.constant 32 : index
      %107 = vector.load %arg6[%c0_78, %c0_79, %c32_80] : memref<1x16x64xf32, #tpu.memory_space<vmem>>, vector<1x16x32xf32>
      %108 = vector.shape_cast %107 : vector<1x16x32xf32> to vector<16x32xf32>
      %109 = vector.shape_cast %106 : vector<16x32xf32> to vector<1x16x32xf32>
      tpu.vector_store %arg6[%c0_78, %c0_79, %c32_80], %109 {strides = array<i32>} : memref<1x16x64xf32, #tpu.memory_space<vmem>>, vector<1x16x32xf32>,
    } else {
    }
    return
  }
  func.func @transform_0(%arg0: i32, %arg1: i32, %arg2: i32) -> (i32, i32, i32) {
    %c0_i32 = arith.constant 0 : i32
    %c0_i32_0 = arith.constant 0 : i32
    return %arg0, %arg1, %c0_i32 : i32, i32, i32
  }
  func.func @transform_1(%arg0: i32, %arg1: i32, %arg2: i32) -> (i32, i32, i32) {
    %c0_i32 = arith.constant 0 : i32
    %c0_i32_0 = arith.constant 0 : i32
    return %arg0, %arg2, %c0_i32 : i32, i32, i32
  }
  func.func @transform_2(%arg0: i32, %arg1: i32, %arg2: i32) -> (i32, i32, i32) {
    %c0_i32 = arith.constant 0 : i32
    %c0_i32_0 = arith.constant 0 : i32
    return %arg0, %arg2, %c0_i32 : i32, i32, i32
  }
  func.func @transform_3(%arg0: i32, %arg1: i32, %arg2: i32) -> (i32, i32, i32) {
    %c0_i32 = arith.constant 0 : i32
    %c0_i32_0 = arith.constant 0 : i32
    return %arg0, %arg1, %c0_i32 : i32, i32, i32
  }
}

</mosaic_0001>

<llo_original>
// kernel: tpu_custom_call.1
$region0: #{tpu_custom_call.1}
  #allocation0 [shape = 'u32[]', space=smem, size = 0x4, offset = 0x4, fixed_abs, tag = 'smem constant byte address 0x4 - core index']
  #allocation1 [shape = 'u32[72,128]{1,0:T(1,128)}', space=vmem, size = 0x9000, scoped, tag = 'internal scratch']
  #allocation2 [shape = 'f32[2,16,32]{2,1,0:T(8,128)}', space=vmem, size = 0x4000, scoped, tag = 'scratch operand']
  #allocation3 [shape = 'f32[2,16,1]{2,1,0:T(8,128)}', space=vmem, size = 0x4000, scoped, tag = 'scratch operand']
  #allocation4 [shape = 'f32[2,16,1]{2,1,0:T(8,128)}', space=vmem, size = 0x4000, scoped, tag = 'scratch operand']
  #allocation5 [shape = 'f32[2,16,32]{2,1,0:T(8,128)}', space=vmem, size = 0x4000, scoped, tag = 'scratch operand']
  %s0 = inlined_call_operand.hbm [shape: f32[2,16,64], index: 0, kind: input, shape index: {}]
  %s1 = inlined_call_operand.hbm [shape: f32[2,16,64], index: 1, kind: input, shape index: {}]
  %s2 = inlined_call_operand.hbm [shape: f32[2,16,64], index: 2, kind: input, shape index: {}]
  %s3 = inlined_call_operand.hbm [shape: f32[2,16,64], index: 3, kind: output, shape index: {}]
  %s4 = sld [smem:[#allocation0]]
  $region65: #{tpu_custom_call.1} parent=0
    _
  %s6 = ssub.s32 1, %s4
  %s7 = scalar_select 0, %s6, %s4
  $region1: #{tpu_custom_call.1} parent=0
    #allocation6 [shape = 'u8[16384]{0}', space=vmem, size = 0x4000, scoped, tag = 'input window, operand 0']
    #allocation7 [shape = 's32[2]{0}', space=sflag, size = 0x8, scoped, tag = 'scoped memory for tpu_custom_call.1']
    #allocation8 [shape = 's32[2]{0}', space=sflag, size = 0x8, scoped, tag = 'scoped memory for tpu_custom_call.1']
    #allocation9 [shape = 'u8[16384]{0}', space=vmem, size = 0x4000, scoped, tag = 'input window, operand 1']
    #allocation10 [shape = 's32[2]{0}', space=sflag, size = 0x8, scoped, tag = 'scoped memory for tpu_custom_call.1']
    #allocation11 [shape = 'u8[16384]{0}', space=vmem, size = 0x4000, scoped, tag = 'input window, operand 2']
    #allocation12 [shape = 'u8[16384]{0}', space=vmem, size = 0x4000, scoped, tag = 'output window, operand 0']
    %8 = vsyncpa [#allocation7], 0
    %s9 = scalar_lea.sflag [#allocation7], 1
    %10 = vsyncpa %s9, 0
    %11 = vsyncpa [#allocation10], 0
    %s12 = scalar_lea.sflag [#allocation10], 1
    %13 = vsyncpa %s12, 0
    %14 = vsyncpa [#allocation8], 0
    %s15 = scalar_lea.sflag [#allocation8], 1
    %16 = vsyncpa %s15, 0
    loop: start=0, step=1, limit=4
    $region2: #{tpu_custom_call.1} parent=1 // loop_pre_header
      _
    $region3: #{tpu_custom_call.1} parent=1 // loop_header
      %s18 = sphi 0, %s22
      %p19 = scmp.ge.s32.totalorder %s18, 4
      %s25 = sphi 0, %s44
      %s26 = sphi 0, %s40
      %s27 = sphi 0, %s36
      %s28 = sphi 0, %s25
      %s29 = sphi 0, %s26
      %s30 = sphi 0, %s27
      %s31 = sphi 0, %s28
      %s32 = sphi 0, %s29
      %s33 = sphi 0, %s30
      %s49 = sphi 0, %s51
      %s52 = sphi 0, %s49
      %s53 = sphi 0, %s52
      %s69 = sphi 0, %s53
      %s77 = sphi 0, %s79
      %s80 = sphi 0, %s77
      %s81 = sphi 0, %s80
      %s97 = sphi 0, %s81
      %s105 = sphi 0, %s107
      %s108 = sphi 0, %s105
      %s109 = sphi 0, %s108
      %s125 = sphi 0, %s109
      %s133 = sphi 0, %s135
      %s136 = sphi 0, %s133
      %s137 = sphi 0, %s136
      %s153 = sphi 0, %s137
    $region4: #{tpu_custom_call.1} parent=1 // loop_header_branch
      %21 = sbr.rel (%p19) target = $region8
    $region5: #{tpu_custom_call.1} parent=1 // loop_body
      %s23 = ssub.s32 %s18, 1
      %s24 = ssub.s32 %s18, 2
      %s34 = sadd.s32 1, %s27
      %p35 = scmp.ge.s32.totalorder %s34, 1
      %s36 = scalar_select %p35, 0, %s34
      %s37 = sadd.s32 1, %s26
      %s38 = scalar_select %p35, %s37, %s26
      %p39 = scmp.ge.s32.totalorder %s38, 1
      %s40 = scalar_select %p39, 0, %s38
      %s41 = sadd.s32 1, %s25
      %s42 = scalar_select %p39, %s41, %s25
      %p43 = scmp.ge.s32.totalorder %s42, 2
      %s44 = scalar_select %p43, 0, %s42
      %s45 = ssub.s32 %s25, %s44
      %s46 = ssub.s32 %s26, %s40
      %s47 = sor.u32 %s45, %s46
      %p48 = scmp.eq.s32.totalorder %s47, 0
      %s50 = sadd.s32 %s49, 1
      %s51 = scalar_select %p48, %s49, %s50
      %p54 = pneg %p48
      %p55 = scmp.eq.s32.totalorder %s18, 1
      %p56 = por %p54, %p55
      %p57 = scmp.ne.s32.totalorder %s49, %s52
      %p58 = scmp.eq.s32.totalorder %s18, 0
      %p59 = por %p57, %p58
      %p60 = scmp.ne.s32.totalorder %s49, %s52
      %p61 = scmp.eq.s32.totalorder %s23, 1
      %p62 = por %p60, %p61
      %p63 = scmp.ne.s32.totalorder %s52, %s53
      %p64 = scmp.eq.s32.totalorder %s23, 0
      %p65 = por %p63, %p64
      %p66 = scmp.ne.s32.totalorder %s52, %s53
      %p67 = scmp.eq.s32.totalorder %s24, 1
      %p68 = por %p66, %p67
      %p70 = scmp.ne.s32.totalorder %s53, %s69
      %p71 = scmp.eq.s32.totalorder %s24, 0
      %p72 = por %p70, %p71
      %s73 = ssub.s32 %s25, %s44
      %s74 = ssub.s32 %s27, %s36
      %s75 = sor.u32 %s73, %s74
      %p76 = scmp.eq.s32.totalorder %s75, 0
      %s78 = sadd.s32 %s77, 1
      %s79 = scalar_select %p76, %s77, %s78
      %p82 = pneg %p76
      %p83 = scmp.eq.s32.totalorder %s18, 1
      %p84 = por %p82, %p83
      %p85 = scmp.ne.s32.totalorder %s77, %s80
      %p86 = scmp.eq.s32.totalorder %s18, 0
      %p87 = por %p85, %p86
      %p88 = scmp.ne.s32.totalorder %s77, %s80
      %p89 = scmp.eq.s32.totalorder %s23, 1
      %p90 = por %p88, %p89
      %p91 = scmp.ne.s32.totalorder %s80, %s81
      %p92 = scmp.eq.s32.totalorder %s23, 0
      %p93 = por %p91, %p92
      %p94 = scmp.ne.s32.totalorder %s80, %s81
      %p95 = scmp.eq.s32.totalorder %s24, 1
      %p96 = por %p94, %p95
      %p98 = scmp.ne.s32.totalorder %s81, %s97
      %p99 = scmp.eq.s32.totalorder %s24, 0
      %p100 = por %p98, %p99
      %s101 = ssub.s32 %s25, %s44
      %s102 = ssub.s32 %s27, %s36
      %s103 = sor.u32 %s101, %s102
      %p104 = scmp.eq.s32.totalorder %s103, 0
      %s106 = sadd.s32 %s105, 1
      %s107 = scalar_select %p104, %s105, %s106
      %p110 = pneg %p104
      %p111 = scmp.eq.s32.totalorder %s18, 1
      %p112 = por %p110, %p111
      %p113 = scmp.ne.s32.totalorder %s105, %s108
      %p114 = scmp.eq.s32.totalorder %s18, 0
      %p115 = por %p113, %p114
      %p116 = scmp.ne.s32.totalorder %s105, %s108
      %p117 = scmp.eq.s32.totalorder %s23, 1
      %p118 = por %p116, %p117
      %p119 = scmp.ne.s32.totalorder %s108, %s109
      %p120 = scmp.eq.s32.totalorder %s23, 0
      %p121 = por %p119, %p120
      %p122 = scmp.ne.s32.totalorder %s108, %s109
      %p123 = scmp.eq.s32.totalorder %s24, 1
      %p124 = por %p122, %p123
      %p126 = scmp.ne.s32.totalorder %s109, %s125
      %p127 = scmp.eq.s32.totalorder %s24, 0
      %p128 = por %p126, %p127
      %s129 = ssub.s32 %s25, %s44
      %s130 = ssub.s32 %s26, %s40
      %s131 = sor.u32 %s129, %s130
      %p132 = scmp.eq.s32.totalorder %s131, 0
      %s134 = sadd.s32 %s133, 1
      %s135 = scalar_select %p132, %s133, %s134
      %p138 = pneg %p132
      %p139 = scmp.eq.s32.totalorder %s18, 1
      %p140 = por %p138, %p139
      %p141 = scmp.ne.s32.totalorder %s133, %s136
      %p142 = scmp.eq.s32.totalorder %s18, 0
      %p143 = por %p141, %p142
      %p144 = scmp.ne.s32.totalorder %s133, %s136
      %p145 = scmp.eq.s32.totalorder %s23, 1
      %p146 = por %p144, %p145
      %p147 = scmp.ne.s32.totalorder %s136, %s137
      %p148 = scmp.eq.s32.totalorder %s23, 0
      %p149 = por %p147, %p148
      %p150 = scmp.ne.s32.totalorder %s136, %s137
      %p151 = scmp.eq.s32.totalorder %s24, 1
      %p152 = por %p150, %p151
      %p154 = scmp.ne.s32.totalorder %s137, %s153
      %p155 = scmp.eq.s32.totalorder %s24, 0
      %p156 = por %p154, %p155
      %p157 = scmp.le.s32.totalorder 1, %s18
      %p158 = scmp.lt.s32.totalorder %s18, 3
      %p159 = pnand %p157, %p158
      %p160 = pneg %p159
      // Predicated region
      $region9: #{tpu_custom_call.1} parent=5 // pred_check
        _
      $region10: #{tpu_custom_call.1} parent=5 // pred_check_branch
        %162 = sbr.rel (%p159) target = $region12
      $region11: #{tpu_custom_call.1} parent=5 // pred_region
        %s163 = ssub.s32 %s18, 1
      $region12: #{tpu_custom_call.1} parent=5 // pred_fallthru
        _
      %p164 = scmp.lt.s32.totalorder %s18, 2
      // Predicated region
      $region13: #{tpu_custom_call.1} parent=5 // pred_check
        %p165 = pneg %p164
      $region14: #{tpu_custom_call.1} parent=5 // pred_check_branch
        %167 = sbr.rel (%p165) target = $region16
      $region15: #{tpu_custom_call.1} parent=5 // pred_region
        // Predicated region
        $region17: #{tpu_custom_call.1} parent=15 // pred_check
          %p168 = pneg %p59
        $region18: #{tpu_custom_call.1} parent=15 // pred_check_branch
          %170 = sbr.rel (%p168) target = $region20
        $region19: #{tpu_custom_call.1} parent=15 // pred_region
          %s171 = sand.u32 %s49, 1
          %s172 = scalar_lea.sflag [#allocation7], %s171
          %s173 = sand.u32 %s49, 1
          %s174 = smul.addr %s173, 16
          %s175 = scalar_lea.vmem [#allocation6], %s174
          %s176 = smul.u32 2, %s26
          %178 = vsyncadd %s172, 0
          %s179 = smul.addr %s25, 2
          %s180 = sadd.s32 %s176, %s179
          %s181 = smul.addr %s180, 8
          %s182 = scalar_lea.hbm %s0, %s181
          %s183 = sshll.u32 %s182, 4
          %s184 = int_to_ptr.hbm [resolvable:$true] %s183
          %s185 = sshll.u32 %s175, 4
          %s186 = int_to_ptr.vmem [resolvable:$true] %s185
          %191 = dma.hbm_to_vmem [thread:$0]  %s184, 256, %s186, %s172, 128, 128, 8
        $region20: #{tpu_custom_call.1} parent=15 // pred_fallthru
          _
        // Predicated region
        $region21: #{tpu_custom_call.1} parent=15 // pred_check
          %p192 = pneg %p87
        $region22: #{tpu_custom_call.1} parent=15 // pred_check_branch
          %194 = sbr.rel (%p192) target = $region24
        $region23: #{tpu_custom_call.1} parent=15 // pred_region
          %s195 = sand.u32 %s18, 1
          %s196 = scalar_lea.sflag [#allocation10], %s195
          %s197 = sand.u32 %s77, 1
          %s198 = smul.addr %s197, 16
          %s199 = scalar_lea.vmem [#allocation9], %s198
          %s200 = smul.u32 2, %s27
          %202 = vsyncadd %s196, 0
          %s203 = smul.addr %s25, 2
          %s204 = sadd.s32 %s200, %s203
          %s205 = smul.addr %s204, 8
          %s206 = scalar_lea.hbm %s1, %s205
          %s207 = sshll.u32 %s206, 4
          %s208 = int_to_ptr.hbm [resolvable:$true] %s207
          %s209 = sshll.u32 %s199, 4
          %s210 = int_to_ptr.vmem [resolvable:$true] %s209
          %215 = dma.hbm_to_vmem [thread:$0]  %s208, 256, %s210, %s196, 128, 128, 8
        $region24: #{tpu_custom_call.1} parent=15 // pred_fallthru
          _
        // Predicated region
        $region25: #{tpu_custom_call.1} parent=15 // pred_check
          %p216 = pneg %p115
        $region26: #{tpu_custom_call.1} parent=15 // pred_check_branch
          %218 = sbr.rel (%p216) target = $region28
        $region27: #{tpu_custom_call.1} parent=15 // pred_region
          %s219 = sand.u32 %s18, 1
          %s220 = scalar_lea.sflag [#allocation10], %s219
          %s221 = sand.u32 %s105, 1
          %s222 = smul.addr %s221, 16
          %s223 = scalar_lea.vmem [#allocation11], %s222
          %s224 = smul.u32 2, %s27
          %226 = vsyncadd %s220, 0
          %s227 = smul.addr %s25, 2
          %s228 = sadd.s32 %s224, %s227
          %s229 = smul.addr %s228, 8
          %s230 = scalar_lea.hbm %s2, %s229
          %s231 = sshll.u32 %s230, 4
          %s232 = int_to_ptr.hbm [resolvable:$true] %s231
          %s233 = sshll.u32 %s223, 4
          %s234 = int_to_ptr.vmem [resolvable:$true] %s233
          %239 = dma.hbm_to_vmem [thread:$0]  %s232, 256, %s234, %s220, 128, 128, 8
        $region28: #{tpu_custom_call.1} parent=15 // pred_fallthru
          _
      $region16: #{tpu_custom_call.1} parent=5 // pred_fallthru
        _
      %p240 = scmp.le.s32.totalorder 1, %s18
      %p241 = scmp.lt.s32.totalorder %s18, 3
      %p242 = pnand %p240, %p241
      %p243 = pneg %p242
      // Predicated region
      $region29: #{tpu_custom_call.1} parent=5 // pred_check
        _
      $region30: #{tpu_custom_call.1} parent=5 // pred_check_branch
        %245 = sbr.rel (%p242) target = $region32
      $region31: #{tpu_custom_call.1} parent=5 // pred_region
        %s246 = ssub.s32 %s18, 1
        %s247 = sand.u32 %s52, 1
        %s248 = scalar_lea.sflag [#allocation7], %s247
        %s249 = sand.u32 %s52, 1
        %s250 = smul.addr %s249, 16
        %s251 = scalar_lea.vmem [#allocation6], %s250
        // Predicated region
        $region33: #{tpu_custom_call.1} parent=31 // pred_check
          %p252 = pneg %p65
        $region34: #{tpu_custom_call.1} parent=31 // pred_check_branch
          %254 = sbr.rel (%p252) target = $region36
        $region35: #{tpu_custom_call.1} parent=31 // pred_region
          %256 = dma.done %s248, 256
        $region36: #{tpu_custom_call.1} parent=31 // pred_fallthru
          _
        %s257 = sand.u32 %s23, 1
        %s258 = scalar_lea.sflag [#allocation10], %s257
        %s259 = sand.u32 %s80, 1
        %s260 = smul.addr %s259, 16
        %s261 = scalar_lea.vmem [#allocation9], %s260
        // Predicated region
        $region37: #{tpu_custom_call.1} parent=31 // pred_check
          %p262 = pneg %p93
        $region38: #{tpu_custom_call.1} parent=31 // pred_check_branch
          %264 = sbr.rel (%p262) target = $region40
        $region39: #{tpu_custom_call.1} parent=31 // pred_region
          %266 = dma.done %s258, 256
        $region40: #{tpu_custom_call.1} parent=31 // pred_fallthru
          _
        %s267 = sand.u32 %s23, 1
        %s268 = scalar_lea.sflag [#allocation10], %s267
        %s269 = sand.u32 %s108, 1
        %s270 = smul.addr %s269, 16
        %s271 = scalar_lea.vmem [#allocation11], %s270
        // Predicated region
        $region41: #{tpu_custom_call.1} parent=31 // pred_check
          %p272 = pneg %p121
        $region42: #{tpu_custom_call.1} parent=31 // pred_check_branch
          %274 = sbr.rel (%p272) target = $region44
        $region43: #{tpu_custom_call.1} parent=31 // pred_region
          %276 = dma.done %s268, 256
        $region44: #{tpu_custom_call.1} parent=31 // pred_fallthru
          _
        %s277 = sand.u32 %s52, 1
        %s278 = scalar_lea.sflag [#allocation7], %s277
        %s279 = sand.u32 %s52, 1
        %s280 = smul.addr %s279, 16
        %s281 = scalar_lea.vmem [#allocation6], %s280
        %p282 = pneg %p65
        %p283 = pneg %p62
        %s284 = sand.u32 %s23, 1
        %s285 = scalar_lea.sflag [#allocation10], %s284
        %s286 = sand.u32 %s80, 1
        %s287 = smul.addr %s286, 16
        %s288 = scalar_lea.vmem [#allocation9], %s287
        %p289 = pneg %p93
        %p290 = pneg %p90
        %s291 = sand.u32 %s23, 1
        %s292 = scalar_lea.sflag [#allocation10], %s291
        %s293 = sand.u32 %s108, 1
        %s294 = smul.addr %s293, 16
        %s295 = scalar_lea.vmem [#allocation11], %s294
        %p296 = pneg %p121
        %p297 = pneg %p118
        %p298 = pneg %p149
        %p299 = pneg %p146
        %s300 = sand.u32 %s136, 1
        %s301 = scalar_lea.sflag [#allocation8], %s300
        %s302 = sand.u32 %s136, 1
        %s303 = smul.addr %s302, 16
        %s304 = scalar_lea.vmem [#allocation12], %s303
        %s305 = smul.u32 2, %s29
        %s306 = smul.u32 2, %s30
        %s307 = smul.u32 2, %s30
        %s308 = smul.u32 2, %s29
        %p309 = scmp.eq.s32.totalorder %s30, 0
        // Predicated region
        $region45: #{tpu_custom_call.1} parent=31 // pred_check
          %p310 = pneg %p309
        $region46: #{tpu_custom_call.1} parent=31 // pred_check_branch
          %312 = sbr.rel (%p310) target = $region48
        $region47: #{tpu_custom_call.1} parent=31 // pred_region
          %vm313 = vcmask 7168
          %314 = vst.msk [vmem:[#allocation3] sm:$0xff] %vm313, -inf
          %315 = vst.msk [vmem:[#allocation3 + $0x8] sm:$0xff] %vm313, -inf
          %316 = vst.msk [vmem:[#allocation3 + $0x10] sm:$0xff] %vm313, -inf
          %317 = vst.msk [vmem:[#allocation3 + $0x18] sm:$0xff] %vm313, -inf
          %318 = vst.msk [vmem:[#allocation4] sm:$0xff] %vm313, 0.0
          %319 = vst.msk [vmem:[#allocation4 + $0x8] sm:$0xff] %vm313, 0.0
          %320 = vst.msk [vmem:[#allocation4 + $0x10] sm:$0xff] %vm313, 0.0
          %321 = vst.msk [vmem:[#allocation4 + $0x18] sm:$0xff] %vm313, 0.0
          %vm322 = vcmask 261120
          %323 = vst.msk [vmem:[#allocation5] sm:$0xff] %vm322, 0.0
          %324 = vst.msk [vmem:[#allocation5 + $0x8] sm:$0xff] %vm322, 0.0
          %325 = vst.msk [vmem:[#allocation5 + $0x10] sm:$0xff] %vm322, 0.0
          %326 = vst.msk [vmem:[#allocation5 + $0x18] sm:$0xff] %vm322, 0.0
          %v327 = vld [vmem:[%s251] sm:$0xff]
          %v328 = vld [vmem:[%s251 + $0x8] sm:$0xff]
          %v329 = vmul.f32 %v327, 0.17677669
          %v330 = vmul.f32 %v328, 0.17677669
          %331 = vst.msk [vmem:[#allocation2] sm:$0xff] %vm322, %v329
          %332 = vst.msk [vmem:[#allocation2 + $0x8] sm:$0xff] %vm322, %v330
          %v333 = vld [vmem:[%s251] sm:$0xff]
          %v334 = vld [vmem:[%s251 + $0x8] sm:$0xff]
          %v335 = vmul.f32 %v333, 0.17677669
          %v336 = vmul.f32 %v334, 0.17677669
          %339 = vrot.lane.b32.xlu0 %v335, 96
          %v340 = vpop.permute.xlu0 %339
          %341 = vrot.lane.b32.xlu0 %v336, 96
          %v342 = vpop.permute.xlu0 %341
          %s345 = scalar_lea.vmem [#allocation2], 16
          %346 = vst.msk [vmem:[%s345] sm:$0xff] %vm322, %v340
          %347 = vst.msk [vmem:[%s345 + $0x8] sm:$0xff] %vm322, %v342
        $region48: #{tpu_custom_call.1} parent=31 // pred_fallthru
          _
        %v348 = vld [vmem:[#allocation2] sm:$0xff]
        %v349 = vld [vmem:[#allocation2 + $0x8] sm:$0xff]
        %v350 = vld [vmem:[%s261] sm:$0xff]
        %v351 = vld [vmem:[%s261 + $0x8] sm:$0xff]
        %v352 = vld [vmem:[%s271] sm:$0xff]
        %v353 = vld [vmem:[%s271 + $0x8] sm:$0xff]
        %vm354 = vcmask 261120
        %v356 = vsel %vm354, %v348, 0
        %v359 = vsel %vm354, %v349, 0
        %v362 = vsel %vm354, %v350, 0
        %v365 = vsel %vm354, %v351, 0
        %367 = vmatpush.xpose.msra.mxu0 0.0
        %368 = vmatpush.xpose.msra.mxu0 0.0
        %369 = vmatpush.xpose.msra.mxu0 0.0
        %370 = vmatpush.xpose.msra.mxu0 0.0
        %371 = vmatpush.xpose.msra.mxu0 0.0
        %372 = vmatpush.xpose.msra.mxu0 0.0
        %373 = vmatpush.xpose.msra.mxu0 0.0
        %374 = vmatpush.xpose.msra.mxu0 0.0
        %375 = vmatpush.xpose.msra.mxu0 0.0
        %376 = vmatpush.xpose.msra.mxu0 0.0
        %377 = vmatpush.xpose.msra.mxu0 0.0
        %378 = vmatpush.xpose.msra.mxu0 0.0
        %379 = vmatpush.xpose.msra.mxu0 0.0
        %380 = vmatpush.xpose.msra.mxu0 0.0
        %381 = vmatpush.xpose.msra.mxu0 %v365
        %382 = vmatpush.xpose.msra.mxu0 %v362
        %383 = vmatmul.f32.gmra.mxu0 %v356
        %v384 = vpop.f32.mrf.mxu0
        %v385 = vadd.f32 0.0, %v384
        %386 = vmatmul.f32.gmra.mxu0 %v359
        %v387 = vpop.f32.mrf.mxu0
        %v388 = vadd.f32 0.0, %v387
        %389 = vdwg.mxu0
        %v390 = vld [vmem:[#allocation3] sm:$0xff]
        %v391 = vld [vmem:[#allocation3 + $0x8] sm:$0xff]
        %vm392 = vcmask 130048
        %v393 = vsel %vm392, %v385, -inf
        %394 = vmax.xlane.f32.xlu0 %v393
        %v395 = vpop.xlane.xlu0 %394
        %v396 = vsel %vm392, %v388, -inf
        %397 = vmax.xlane.f32.xlu0 %v396
        %v398 = vpop.xlane.xlu0 %397
        %v399 = vmax.f32 %v390, %v395
        %v400 = vmax.f32 %v391, %v398
        %v401 = vsub.f32 %v390, %v399
        %v402 = vsub.f32 %v391, %v400
        %v403 = vmul.f32 %v401, 1.442695
        %v404 = vpow.pop %v403
        %v405 = vmul.f32 %v402, 1.442695
        %v406 = vpow.pop %v405
        %408 = vset.pattern.permute.xlu0 0
        %409 = vperm.xlu0 %408, %v399
        %v410 = vpop.permute.xlu0 %409
        %413 = vset.pattern.permute.xlu0 0
        %414 = vperm.xlu0 %413, %v400
        %v415 = vpop.permute.xlu0 %414
        %v417 = vsub.f32 %v385, %v410
        %v418 = vsub.f32 %v388, %v415
        %v419 = vmul.f32 %v417, 1.442695
        %v420 = vpow.pop %v419
        %v421 = vmul.f32 %v418, 1.442695
        %v422 = vpow.pop %v421
        %v423 = vld [vmem:[#allocation4] sm:$0xff]
        %v424 = vld [vmem:[#allocation4 + $0x8] sm:$0xff]
        %v425 = vmul.f32 %v404, %v423
        %v426 = vmul.f32 %v406, %v424
        %v427 = vsel %vm392, %v420, 0.0
        %428 = vadd.xlane.f32.xlu0 %v427
        %v429 = vpop.xlane.xlu0 %428
        %v430 = vsel %vm392, %v422, 0.0
        %431 = vadd.xlane.f32.xlu0 %v430
        %v432 = vpop.xlane.xlu0 %431
        %v433 = vadd.f32 %v425, %v429
        %v434 = vadd.f32 %v426, %v432
        %vm435 = vcmask 7168
        %436 = vst.msk [vmem:[#allocation4] sm:$0xff] %vm435, %v433
        %437 = vst.msk [vmem:[#allocation4 + $0x8] sm:$0xff] %vm435, %v434
        %v438 = vld [vmem:[#allocation5] sm:$0xff]
        %v439 = vld [vmem:[#allocation5 + $0x8] sm:$0xff]
        %441 = vset.pattern.permute.xlu0 0
        %442 = vperm.xlu0 %441, %v404
        %v443 = vpop.permute.xlu0 %442
        %446 = vset.pattern.permute.xlu0 0
        %447 = vperm.xlu0 %446, %v406
        %v448 = vpop.permute.xlu0 %447
        %v450 = vmul.f32 %v443, %v438
        %v451 = vmul.f32 %v448, %v439
        %v453 = vsel %vm392, %v420, 0
        %v456 = vsel %vm392, %v422, 0
        %458 = vmatpush.msra.mxu0 0.0
        %459 = vmatpush.msra.mxu0 0.0
        %460 = vmatpush.msra.mxu0 0.0
        %461 = vmatpush.msra.mxu0 0.0
        %462 = vmatpush.msra.mxu0 0.0
        %463 = vmatpush.msra.mxu0 0.0
        %464 = vmatpush.msra.mxu0 0.0
        %465 = vmatpush.msra.mxu0 0.0
        %466 = vmatpush.msra.mxu0 0.0
        %467 = vmatpush.msra.mxu0 0.0
        %468 = vmatpush.msra.mxu0 0.0
        %469 = vmatpush.msra.mxu0 0.0
        %470 = vmatpush.msra.mxu0 0.0
        %471 = vmatpush.msra.mxu0 0.0
        %472 = vmatpush.msra.mxu0 %v353
        %473 = vmatpush.msra.mxu0 %v352
        %474 = vmatmul.f32.gmra.mxu0 %v453
        %v475 = vpop.f32.mrf.mxu0
        %v476 = vadd.f32 0.0, %v475
        %477 = vmatmul.f32.gmra.mxu0 %v456
        %v478 = vpop.f32.mrf.mxu0
        %v479 = vadd.f32 0.0, %v478
        %480 = vdwg.mxu0
        %v481 = vadd.f32 %v450, %v476
        %v482 = vadd.f32 %v451, %v479
        %483 = vst.msk [vmem:[#allocation5] sm:$0xff] %vm354, %v481
        %484 = vst.msk [vmem:[#allocation5 + $0x8] sm:$0xff] %vm354, %v482
        %485 = vst.msk [vmem:[#allocation3] sm:$0xff] %vm435, %v399
        %486 = vst.msk [vmem:[#allocation3 + $0x8] sm:$0xff] %vm435, %v400
        %s487 = scalar_lea.vmem [#allocation2], 16
        %v488 = vld [vmem:[%s487] sm:$0xff]
        %v489 = vld [vmem:[%s487 + $0x8] sm:$0xff]
        %v490 = vld [vmem:[%s261] sm:$0xff]
        %v491 = vld [vmem:[%s261 + $0x8] sm:$0xff]
        %v492 = vld [vmem:[%s271] sm:$0xff]
        %v493 = vld [vmem:[%s271 + $0x8] sm:$0xff]
        %496 = vrot.lane.b32.xlu0 %v490, 96
        %v497 = vpop.permute.xlu0 %496
        %498 = vrot.lane.b32.xlu0 %v491, 96
        %v499 = vpop.permute.xlu0 %498
        %v501 = vsel %vm354, %v488, 0
        %v504 = vsel %vm354, %v489, 0
        %v506 = vsel %vm354, %v497, 0
        %v508 = vsel %vm354, %v499, 0
        %510 = vmatpush.xpose.msra.mxu0 0.0
        %511 = vmatpush.xpose.msra.mxu0 0.0
        %512 = vmatpush.xpose.msra.mxu0 0.0
        %513 = vmatpush.xpose.msra.mxu0 0.0
        %514 = vmatpush.xpose.msra.mxu0 0.0
        %515 = vmatpush.xpose.msra.mxu0 0.0
        %516 = vmatpush.xpose.msra.mxu0 0.0
        %517 = vmatpush.xpose.msra.mxu0 0.0
        %518 = vmatpush.xpose.msra.mxu0 0.0
        %519 = vmatpush.xpose.msra.mxu0 0.0
        %520 = vmatpush.xpose.msra.mxu0 0.0
        %521 = vmatpush.xpose.msra.mxu0 0.0
        %522 = vmatpush.xpose.msra.mxu0 0.0
        %523 = vmatpush.xpose.msra.mxu0 0.0
        %524 = vmatpush.xpose.msra.mxu0 %v508
        %525 = vmatpush.xpose.msra.mxu0 %v506
        %526 = vmatmul.f32.gmra.mxu0 %v501
        %v527 = vpop.f32.mrf.mxu0
        %v528 = vadd.f32 0.0, %v527
        %529 = vmatmul.f32.gmra.mxu0 %v504
        %v530 = vpop.f32.mrf.mxu0
        %v531 = vadd.f32 0.0, %v530
        %532 = vdwg.mxu0
        %s533 = scalar_lea.vmem [#allocation3], 16
        %v534 = vld [vmem:[%s533] sm:$0xff]
        %v535 = vld [vmem:[%s533 + $0x8] sm:$0xff]
        %v536 = vsel %vm392, %v528, -inf
        %537 = vmax.xlane.f32.xlu0 %v536
        %v538 = vpop.xlane.xlu0 %537
        %v539 = vsel %vm392, %v531, -inf
        %540 = vmax.xlane.f32.xlu0 %v539
        %v541 = vpop.xlane.xlu0 %540
        %v542 = vmax.f32 %v534, %v538
        %v543 = vmax.f32 %v535, %v541
        %v544 = vsub.f32 %v534, %v542
        %v545 = vsub.f32 %v535, %v543
        %v546 = vmul.f32 %v544, 1.442695
        %v547 = vpow.pop %v546
        %v548 = vmul.f32 %v545, 1.442695
        %v549 = vpow.pop %v548
        %551 = vset.pattern.permute.xlu0 0
        %552 = vperm.xlu0 %551, %v542
        %v553 = vpop.permute.xlu0 %552
        %556 = vset.pattern.permute.xlu0 0
        %557 = vperm.xlu0 %556, %v543
        %v558 = vpop.permute.xlu0 %557
        %v560 = vsub.f32 %v528, %v553
        %v561 = vsub.f32 %v531, %v558
        %v562 = vmul.f32 %v560, 1.442695
        %v563 = vpow.pop %v562
        %v564 = vmul.f32 %v561, 1.442695
        %v565 = vpow.pop %v564
        %s566 = scalar_lea.vmem [#allocation4], 16
        %v567 = vld [vmem:[%s566] sm:$0xff]
        %v568 = vld [vmem:[%s566 + $0x8] sm:$0xff]
        %v569 = vmul.f32 %v547, %v567
        %v570 = vmul.f32 %v549, %v568
        %v571 = vsel %vm392, %v563, 0.0
        %572 = vadd.xlane.f32.xlu0 %v571
        %v573 = vpop.xlane.xlu0 %572
        %v574 = vsel %vm392, %v565, 0.0
        %575 = vadd.xlane.f32.xlu0 %v574
        %v576 = vpop.xlane.xlu0 %575
        %v577 = vadd.f32 %v569, %v573
        %v578 = vadd.f32 %v570, %v576
        %579 = vst.msk [vmem:[%s566] sm:$0xff] %vm435, %v577
        %580 = vst.msk [vmem:[%s566 + $0x8] sm:$0xff] %vm435, %v578
        %s581 = scalar_lea.vmem [#allocation5], 16
        %v582 = vld [vmem:[%s581] sm:$0xff]
        %v583 = vld [vmem:[%s581 + $0x8] sm:$0xff]
        %585 = vset.pattern.permute.xlu0 0
        %586 = vperm.xlu0 %585, %v547
        %v587 = vpop.permute.xlu0 %586
        %590 = vset.pattern.permute.xlu0 0
        %591 = vperm.xlu0 %590, %v549
        %v592 = vpop.permute.xlu0 %591
        %v594 = vmul.f32 %v587, %v582
        %v595 = vmul.f32 %v592, %v583
        %598 = vrot.lane.b32.xlu0 %v492, 96
        %v599 = vpop.permute.xlu0 %598
        %600 = vrot.lane.b32.xlu0 %v493, 96
        %v601 = vpop.permute.xlu0 %600
        %v605 = vsel %vm392, %v563, 0
        %v608 = vsel %vm392, %v565, 0
        %610 = vmatpush.msra.mxu0 0.0
        %611 = vmatpush.msra.mxu0 0.0
        %612 = vmatpush.msra.mxu0 0.0
        %613 = vmatpush.msra.mxu0 0.0
        %614 = vmatpush.msra.mxu0 0.0
        %615 = vmatpush.msra.mxu0 0.0
        %616 = vmatpush.msra.mxu0 0.0
        %617 = vmatpush.msra.mxu0 0.0
        %618 = vmatpush.msra.mxu0 0.0
        %619 = vmatpush.msra.mxu0 0.0
        %620 = vmatpush.msra.mxu0 0.0
        %621 = vmatpush.msra.mxu0 0.0
        %622 = vmatpush.msra.mxu0 0.0
        %623 = vmatpush.msra.mxu0 0.0
        %624 = vmatpush.msra.mxu0 %v601
        %625 = vmatpush.msra.mxu0 %v599
        %626 = vmatmul.f32.gmra.mxu0 %v605
        %v627 = vpop.f32.mrf.mxu0
        %v628 = vadd.f32 0.0, %v627
        %629 = vmatmul.f32.gmra.mxu0 %v608
        %v630 = vpop.f32.mrf.mxu0
        %v631 = vadd.f32 0.0, %v630
        %632 = vdwg.mxu0
        %v633 = vadd.f32 %v594, %v628
        %v634 = vadd.f32 %v595, %v631
        %635 = vst.msk [vmem:[%s581] sm:$0xff] %vm354, %v633
        %636 = vst.msk [vmem:[%s581 + $0x8] sm:$0xff] %vm354, %v634
        %637 = vst.msk [vmem:[%s533] sm:$0xff] %vm435, %v542
        %638 = vst.msk [vmem:[%s533 + $0x8] sm:$0xff] %vm435, %v543
        // Predicated region
        $region49: #{tpu_custom_call.1} parent=31 // pred_check
          %p639 = pneg %p309
        $region50: #{tpu_custom_call.1} parent=31 // pred_check_branch
          %641 = sbr.rel (%p639) target = $region52
        $region51: #{tpu_custom_call.1} parent=31 // pred_region
          %v642 = vld [vmem:[#allocation4] sm:$0xff]
          %v643 = vld [vmem:[#allocation4 + $0x8] sm:$0xff]
          %v644 = vrcp.pop %v642
          %v645 = vrcp.pop %v643
          %v646 = vmul.f32 %v642, %v644
          %v647 = vmul.f32 %v643, %v645
          %v648 = vsub.f32 2.0, %v646
          %v649 = vsub.f32 2.0, %v647
          %v650 = vmul.f32 %v644, %v648
          %v651 = vmul.f32 %v645, %v649
          %v652 = vld [vmem:[#allocation5] sm:$0xff]
          %v653 = vld [vmem:[#allocation5 + $0x8] sm:$0xff]
          %655 = vset.pattern.permute.xlu0 0
          %656 = vperm.xlu0 %655, %v650
          %v657 = vpop.permute.xlu0 %656
          %660 = vset.pattern.permute.xlu0 0
          %661 = vperm.xlu0 %660, %v651
          %v662 = vpop.permute.xlu0 %661
          %v664 = vmul.f32 %v652, %v657
          %v665 = vmul.f32 %v653, %v662
          %666 = vst.msk [vmem:[%s304] sm:$0xff] %vm354, %v664
          %667 = vst.msk [vmem:[%s304 + $0x8] sm:$0xff] %vm354, %v665
          %v668 = vld [vmem:[%s566] sm:$0xff]
          %v669 = vld [vmem:[%s566 + $0x8] sm:$0xff]
          %v670 = vrcp.pop %v668
          %v671 = vrcp.pop %v669
          %v672 = vmul.f32 %v668, %v670
          %v673 = vmul.f32 %v669, %v671
          %v674 = vsub.f32 2.0, %v672
          %v675 = vsub.f32 2.0, %v673
          %v676 = vmul.f32 %v670, %v674
          %v677 = vmul.f32 %v671, %v675
          %v678 = vld [vmem:[%s581] sm:$0xff]
          %v679 = vld [vmem:[%s581 + $0x8] sm:$0xff]
          %681 = vset.pattern.permute.xlu0 0
          %682 = vperm.xlu0 %681, %v676
          %v683 = vpop.permute.xlu0 %682
          %686 = vset.pattern.permute.xlu0 0
          %687 = vperm.xlu0 %686, %v677
          %v688 = vpop.permute.xlu0 %687
          %v690 = vmul.f32 %v678, %v683
          %v691 = vmul.f32 %v679, %v688
          %694 = vrot.lane.b32.xlu0 %v690, 32
          %v695 = vpop.permute.xlu0 %694
          %696 = vrot.lane.b32.xlu0 %v691, 32
          %v697 = vpop.permute.xlu0 %696
          %vm700 = vcmask 523520
          %701 = vst.msk [vmem:[%s304] sm:$0xff] %vm700, %v695
          %702 = vst.msk [vmem:[%s304 + $0x8] sm:$0xff] %vm700, %v697
        $region52: #{tpu_custom_call.1} parent=31 // pred_fallthru
          _
        %s703 = sand.u32 %s136, 1
        %s704 = scalar_lea.sflag [#allocation8], %s703
        %s705 = sand.u32 %s136, 1
        %s706 = smul.addr %s705, 16
        %s707 = scalar_lea.vmem [#allocation12], %s706
        // Predicated region
        $region53: #{tpu_custom_call.1} parent=31 // pred_check
          %p708 = pneg %p146
        $region54: #{tpu_custom_call.1} parent=31 // pred_check_branch
          %710 = sbr.rel (%p708) target = $region56
        $region55: #{tpu_custom_call.1} parent=31 // pred_region
          %s711 = smul.u32 2, %s29
          %713 = vsyncadd %s704, 0
          %s714 = smul.addr %s28, 2
          %s715 = sadd.s32 %s711, %s714
          %s716 = smul.addr %s715, 8
          %s717 = scalar_lea.hbm %s3, %s716
          %s718 = sshll.u32 %s707, 4
          %s719 = int_to_ptr.vmem [resolvable:$true] %s718
          %s720 = sshll.u32 %s717, 4
          %s721 = int_to_ptr.hbm [resolvable:$true] %s720
          %726 = dma.vmem_to_hbm [thread:$0]  %s719, 256, %s721, %s704, 128, 128, 8
        $region56: #{tpu_custom_call.1} parent=31 // pred_fallthru
          _
      $region32: #{tpu_custom_call.1} parent=5 // pred_fallthru
        _
      %p727 = scmp.le.s32.totalorder 2, %s18
      // Predicated region
      $region57: #{tpu_custom_call.1} parent=5 // pred_check
        %p728 = pneg %p727
      $region58: #{tpu_custom_call.1} parent=5 // pred_check_branch
        %730 = sbr.rel (%p728) target = $region60
      $region59: #{tpu_custom_call.1} parent=5 // pred_region
        %s731 = ssub.s32 %s18, 2
        // Predicated region
        $region61: #{tpu_custom_call.1} parent=59 // pred_check
          %p732 = pneg %p152
        $region62: #{tpu_custom_call.1} parent=59 // pred_check_branch
          %734 = sbr.rel (%p732) target = $region64
        $region63: #{tpu_custom_call.1} parent=59 // pred_region
          %s735 = sand.u32 %s137, 1
          %s736 = scalar_lea.sflag [#allocation8], %s735
          %s737 = sand.u32 %s137, 1
          %s738 = smul.addr %s737, 16
          %s739 = scalar_lea.vmem [#allocation12], %s738
          %741 = dma.done %s736, 256
        $region64: #{tpu_custom_call.1} parent=59 // pred_fallthru
          _
      $region60: #{tpu_custom_call.1} parent=5 // pred_fallthru
        _
    $region6: #{tpu_custom_call.1} parent=1 // loop_footer
      %s22 = sadd.s32 1, %s18
    $region7: #{tpu_custom_call.1} parent=1 // loop_footer_branch
      %17 = sbr.rel target = $region3
    $region8: #{tpu_custom_call.1} parent=1 // loop_exit
      _
    %742 = vsyncpa [#allocation7], 1
    %s743 = scalar_lea.sflag [#allocation7], 1
    %744 = vsyncpa %s743, 1
    %745 = vsyncpa [#allocation10], 1
    %s746 = scalar_lea.sflag [#allocation10], 1
    %747 = vsyncpa %s746, 1
    %748 = vsyncpa [#allocation8], 1
    %s749 = scalar_lea.sflag [#allocation8], 1
    %750 = vsyncpa %s749, 1

</llo_original>
